<compile_context>
chip_gen: v7x
topology: tpu7x:2x2x1
jax: 0.10.0
libtpu: 0.0.40
codegen_flags: <defaults>
</compile_context>

<pallas_src>
import functools

import jax
import jax.numpy as jnp
from jax.experimental import pallas as pl
from jax.experimental.pallas import tpu as pltpu


def _round_up(n, m):
    return ((n + m - 1) // m) * m


def _cdiv(a, b):
    return (a + b - 1) // b


def _default_vmem_limit_bytes():
    """Scoped-VMEM request adapted to the chip (~3/4 of physical VMEM, capped)."""
    try:
        cap = pltpu.get_tpu_info().vmem_capacity_bytes
        return int(min(96 << 20, max(32 << 20, (cap * 3) // 4)))
    except Exception:
        return 48 << 20  # safe on v5e/v6e (128 MiB physical) and v7x (64 MiB)


def _mlp_kernel(n_hidden, n_class, out_dim, x_ref, *refs):
    """Fused MLP forward over one batch tile.

    refs = [W0, s0, W1, s1, ..., W_last, b_last, out]
      W_i : bf16 (k_i, n_i_pad)   -- BN scale folded in (hidden layers)
      s_i : f32  (1, n_i_pad)     -- folded bias + BN shift
      out : bf16 (TB, out_dim)    -- unpadded class lanes
    """
    out_ref = refs[-1]
    p = refs[:-1]

    h = x_ref[...]                                     # bf16 (TB, d_in)
    idx = 0
    for _ in range(n_hidden):
        w = p[idx][...]
        s = p[idx + 1][...]
        idx += 2
        z = jnp.dot(h, w, preferred_element_type=jnp.float32) + s
        z = jnp.where(z >= 0.0, z, 0.2 * z)            # LeakyReLU(0.2)
        # Dropout(0.5): identity in eval mode.
        h = z.astype(jnp.bfloat16)

    w = p[idx][...]
    b = p[idx + 1][...]
    logits = jnp.dot(h, w, preferred_element_type=jnp.float32) + b  # f32 (TB, n_pad)
    logits = logits[:, :out_dim]                       # drop padded class lanes

    if n_class == 2:
        y = jax.nn.sigmoid(logits)
    else:
        m = jnp.max(logits, axis=1, keepdims=True)
        e = jnp.exp(logits - m)
        y = e * pl.reciprocal(jnp.sum(e, axis=1, keepdims=True), approx=True)
    out_ref[...] = y.astype(out_ref.dtype)


def mlp_clf_forward(x, params, n_class=2, *, block_b=None, vmem_limit_bytes=None):
    """Eval-mode MLPClf forward.

    params: list of per-layer dicts. Hidden layers: W (d_in,d_out), b (1,d_out),
    scale (1,d_out), shift (1,d_out) with BN running stats already folded into
    scale/shift. Final layer: W, b.
    """
    n_hidden = len(params) - 1
    B, d_in = x.shape
    out_dim = params[-1]["W"].shape[1]

    if vmem_limit_bytes is None:
        vmem_limit_bytes = _default_vmem_limit_bytes()

    # ---- fold BN into weights (exact, in f32); pad hidden/class lanes to 128,
    #      keep the layer-0 contraction dim at the true d_in (full-extent block).
    dims = [d_in] + [layer["W"].shape[1] for layer in params]
    pdims = [d_in] + [_round_up(d, 128) for d in dims[1:]]

    flat = []
    weight_bytes = 0
    for i, layer in enumerate(params):
        W = layer["W"].astype(jnp.float32)
        b = layer["b"].astype(jnp.float32)
        if i < n_hidden:
            scale = layer["scale"].astype(jnp.float32)
            shift = layer["shift"].astype(jnp.float32)
            W = W * scale                      # fold BN scale into columns
            b = b * scale + shift              # fold bias through BN affine
        Wp = jnp.pad(
            W, ((0, pdims[i] - dims[i]), (0, pdims[i + 1] - dims[i + 1]))
        ).astype(jnp.bfloat16)
        bp = jnp.pad(b, ((0, 0), (0, pdims[i + 1] - dims[i + 1])))
        flat += [Wp, bp]
        weight_bytes += Wp.size * 2 + bp.size * 4

    # Weights are VMEM-resident across the whole grid (constant index_map), but
    # Pallas allocates 2 buffers per input by default -> charge 2x in the budget.
    resident_bytes = 2 * weight_bytes
    if resident_bytes + (4 << 20) > vmem_limit_bytes:
        # TODO(synk): K/N-tiled inner weight pipeline for very wide MLPs.
        raise ValueError(
            f"Folded weights need ~{resident_bytes} B of VMEM (double-buffered), "
            f"exceeding vmem_limit_bytes={vmem_limit_bytes}; a K/N-tiled weight "
            "pipeline would be required for this configuration.")

    # ---- choose batch tile (multiple of 16 for bf16 sublane packing) ----
    max_pd = max(pdims)
    # per-row VMEM: double-buffered bf16 x/out tiles + a few f32 working copies.
    per_row = 2 * 2 * pdims[0] + 2 * 2 * out_dim + 12 * max_pd
    if block_b is None:
        budget = vmem_limit_bytes - resident_bytes - (4 << 20)
        block_b = (budget // per_row) // 16 * 16
    block_b = max(16, min(2048, _round_up(int(block_b), 16)))

    b16 = _round_up(B, 16)
    tb = min(block_b, b16)
    # Guarantee >= 2 grid steps (when the batch allows it) so the "parallel"
    # batch axis can shard across both TensorCores on v7x; near-free elsewhere.
    if b16 >= 32 and tb >= b16:
        tb = _round_up(_cdiv(b16, 2), 16)
    # Re-balance the tail so padded-row waste is < 16 rows per grid step.
    nsteps = _cdiv(B, tb)
    tb = _round_up(_cdiv(B, nsteps), 16)
    b_pad = nsteps * tb

    xb = x.astype(jnp.bfloat16)
    if b_pad > B:
        xb = jnp.pad(xb, ((0, b_pad - B), (0, 0)))

    grid = (nsteps,)
    x_spec = pl.BlockSpec((tb, d_in), lambda i: (i, 0))
    out_spec = pl.BlockSpec((tb, out_dim), lambda i: (i, 0))
    # Weights/shifts: whole-array blocks with constant index_map -> fetched once,
    # VMEM-resident across the batch grid.
    w_specs = [pl.BlockSpec(a.shape, lambda i: (0, 0)) for a in flat]

    flops = 2 * b_pad * sum(pdims[i] * pdims[i + 1] for i in range(len(params)))
    bytes_accessed = xb.size * 2 + weight_bytes + b_pad * out_dim * 2
    transcendentals = b_pad * (out_dim + 1)

    kernel = functools.partial(_mlp_kernel, n_hidden, n_class, out_dim)
    out = pl.pallas_call(
        kernel,
        out_shape=jax.ShapeDtypeStruct((b_pad, out_dim), jnp.bfloat16),
        grid=grid,
        in_specs=[x_spec] + w_specs,
        out_specs=out_spec,
        compiler_params=pltpu.CompilerParams(
            dimension_semantics=("parallel",),
            vmem_limit_bytes=int(vmem_limit_bytes),
        ),
        cost_estimate=pl.CostEstimate(
            flops=int(flops),
            transcendentals=int(transcendentals),
            bytes_accessed=int(bytes_accessed),
        ),
    )(xb, *flat)

    return out[:B, :]


def init_params(key, input_dim, hidden_dim, n_class=2, eps=1e-5):
    """Deterministic synthetic parameters matching MLPClf.__init__ shapes."""
    params = []
    dims = [input_dim] + list(hidden_dim)
    for i in range(len(hidden_dim)):
        key, kw, kb, kg, kbeta, km, kv = jax.random.split(key, 7)
        d_in, d_out = dims[i], dims[i + 1]
        W = jax.random.normal(kw, (d_in, d_out), jnp.float32) * 0.1
        b = jax.random.normal(kb, (1, d_out), jnp.float32) * 0.1
        gamma = 1.0 + 0.1 * jax.random.normal(kg, (1, d_out), jnp.float32)
        beta = 0.1 * jax.random.normal(kbeta, (1, d_out), jnp.float32)
        running_mean = 0.1 * jax.random.normal(km, (1, d_out), jnp.float32)
        running_var = jnp.abs(1.0 + 0.1 * jax.random.normal(kv, (1, d_out), jnp.float32))
        scale = gamma / jnp.sqrt(running_var + eps)
        shift = beta - running_mean * scale
        params.append({"W": W, "b": b, "scale": scale, "shift": shift})
    # final linear
    out_dim = 1 if n_class == 2 else n_class
    key, kw, kb = jax.random.split(key, 3)
    W = jax.random.normal(kw, (hidden_dim[-1], out_dim), jnp.float32) * 0.1
    b = jax.random.normal(kb, (1, out_dim), jnp.float32) * 0.1
    params.append({"W": W, "b": b})
    return params


def _ref_forward(x, params, n_class=2):
    """Pure-JAX eval-mode reference."""
    h = x.astype(jnp.float32)
    for layer in params[:-1]:
        h = h @ layer["W"] + layer["b"]
        h = h * layer["scale"] + layer["shift"]
        h = jnp.where(h >= 0.0, h, 0.2 * h)
    logits = h @ params[-1]["W"] + params[-1]["b"]
    if n_class == 2:
        return jax.nn.sigmoid(logits)
    return jax.nn.softmax(logits, axis=1)


if __name__ == "__main__":
    # Small shapes consistent with the module: flat feature vectors.
    B = 8
    input_dim = 16
    hidden_dim = [32, 32]
    n_class = 2

    key = jax.random.PRNGKey(0)
    key, kx, kp = jax.random.split(key, 3)
    x = jax.random.normal(kx, (B, input_dim), jnp.float32)
    params = init_params(kp, input_dim, hidden_dim, n_class=n_class)

    y = mlp_clf_forward(x, params, n_class=n_class)
    y = jax.block_until_ready(y)

    assert y.shape == (B, 1)
    assert bool(jnp.all(jnp.isfinite(y.astype(jnp.float32))))
    assert bool(jnp.all((y >= 0.0) & (y <= 1.0)))

    y_ref = _ref_forward(x, params, n_class=n_class)
    assert float(jnp.max(jnp.abs(y.astype(jnp.float32) - y_ref))) < 5e-2  # bf16 tolerance

    print("KERNEL_OK")
</pallas_src>

<mosaic_0001>
module attributes {stable_mosaic.version = 11 : i64} {
  func.func @_mlp_kernel(%arg0: i32, %arg1: memref<16x16xbf16, #tpu.memory_space<vmem>>, %arg2: memref<16x128xbf16, #tpu.memory_space<vmem>>, %arg3: memref<1x128xf32, #tpu.memory_space<vmem>>, %arg4: memref<128x128xbf16, #tpu.memory_space<vmem>>, %arg5: memref<1x128xf32, #tpu.memory_space<vmem>>, %arg6: memref<128x128xbf16, #tpu.memory_space<vmem>>, %arg7: memref<1x128xf32, #tpu.memory_space<vmem>>, %arg8: memref<16x1xbf16, #tpu.memory_space<vmem>>) attributes {dimension_semantics = [#tpu.dimension_semantics<parallel>], iteration_bounds = array<i64: 1>, scalar_prefetch = 0 : i64, scratch_operands = 0 : i64, tpu.core_type = #tpu.core_type<tc>, window_params = [{transform_indices = @transform_0, window_bounds = array<i64: 16, 16>}, {pipeline_mode = #tpu.pipeline_mode<synchronous>, transform_indices = @transform_1, window_bounds = array<i64: 16, 128>}, {pipeline_mode = #tpu.pipeline_mode<synchronous>, transform_indices = @transform_2, window_bounds = array<i64: 1, 128>}, {pipeline_mode = #tpu.pipeline_mode<synchronous>, transform_indices = @transform_3, window_bounds = array<i64: 128, 128>}, {pipeline_mode = #tpu.pipeline_mode<synchronous>, transform_indices = @transform_4, window_bounds = array<i64: 1, 128>}, {pipeline_mode = #tpu.pipeline_mode<synchronous>, transform_indices = @transform_5, window_bounds = array<i64: 128, 128>}, {pipeline_mode = #tpu.pipeline_mode<synchronous>, transform_indices = @transform_6, window_bounds = array<i64: 1, 128>}, {transform_indices = @transform_7, window_bounds = array<i64: 16, 1>}]} {
    %c0 = arith.constant 0 : index
    %c0_0 = arith.constant 0 : index
    %0 = vector.load %arg1[%c0, %c0_0] : memref<16x16xbf16, #tpu.memory_space<vmem>>, vector<16x16xbf16>
    %c0_1 = arith.constant 0 : index
    %c0_2 = arith.constant 0 : index
    %1 = vector.load %arg2[%c0_1, %c0_2] : memref<16x128xbf16, #tpu.memory_space<vmem>>, vector<16x128xbf16>
    %c0_3 = arith.constant 0 : index
    %c0_4 = arith.constant 0 : index
    %2 = vector.load %arg3[%c0_3, %c0_4] : memref<1x128xf32, #tpu.memory_space<vmem>>, vector<1x128xf32>
    %cst = arith.constant dense<0.000000e+00> : vector<16x128xf32>
    %3 = tpu.matmul %0, %1, %cst {dimension_numbers = #tpu.dot_dimension_numbers<[1], [0], [0], [1], [0, 0, 1, 1], [], []>} : vector<16x16xbf16>, vector<16x128xbf16>, vector<16x128xf32> -> vector<16x128xf32>
    %4 = vector.broadcast %2 : vector<1x128xf32> to vector<16x128xf32>
    %5 = arith.addf %3, %4 : vector<16x128xf32>
    %cst_5 = arith.constant 0.000000e+00 : f32
    %6 = vector.broadcast %cst_5 : f32 to vector<16x128xf32>
    %7 = arith.cmpf oge, %5, %6 : vector<16x128xf32>
    %cst_6 = arith.constant 2.000000e-01 : f32
    %8 = vector.broadcast %cst_6 : f32 to vector<16x128xf32>
    %9 = arith.mulf %8, %5 : vector<16x128xf32>
    %10 = arith.select %7, %5, %9 : vector<16x128xi1>, vector<16x128xf32>
    %11 = arith.truncf %10 : vector<16x128xf32> to vector<16x128xbf16>
    %c0_7 = arith.constant 0 : index
    %c0_8 = arith.constant 0 : index
    %12 = vector.load %arg4[%c0_7, %c0_8] : memref<128x128xbf16, #tpu.memory_space<vmem>>, vector<128x128xbf16>
    %c0_9 = arith.constant 0 : index
    %c0_10 = arith.constant 0 : index
    %13 = vector.load %arg5[%c0_9, %c0_10] : memref<1x128xf32, #tpu.memory_space<vmem>>, vector<1x128xf32>
    %cst_11 = arith.constant dense<0.000000e+00> : vector<16x128xf32>
    %14 = tpu.matmul %11, %12, %cst_11 {dimension_numbers = #tpu.dot_dimension_numbers<[1], [0], [0], [1], [0, 0, 1, 1], [], []>} : vector<16x128xbf16>, vector<128x128xbf16>, vector<16x128xf32> -> vector<16x128xf32>
    %15 = vector.broadcast %13 : vector<1x128xf32> to vector<16x128xf32>
    %16 = arith.addf %14, %15 : vector<16x128xf32>
    %cst_12 = arith.constant 0.000000e+00 : f32
    %17 = vector.broadcast %cst_12 : f32 to vector<16x128xf32>
    %18 = arith.cmpf oge, %16, %17 : vector<16x128xf32>
    %cst_13 = arith.constant 2.000000e-01 : f32
    %19 = vector.broadcast %cst_13 : f32 to vector<16x128xf32>
    %20 = arith.mulf %19, %16 : vector<16x128xf32>
    %21 = arith.select %18, %16, %20 : vector<16x128xi1>, vector<16x128xf32>
    %22 = arith.truncf %21 : vector<16x128xf32> to vector<16x128xbf16>
    %c0_14 = arith.constant 0 : index
    %c0_15 = arith.constant 0 : index
    %23 = vector.load %arg6[%c0_14, %c0_15] : memref<128x128xbf16, #tpu.memory_space<vmem>>, vector<128x128xbf16>
    %c0_16 = arith.constant 0 : index
    %c0_17 = arith.constant 0 : index
    %24 = vector.load %arg7[%c0_16, %c0_17] : memref<1x128xf32, #tpu.memory_space<vmem>>, vector<1x128xf32>
    %cst_18 = arith.constant dense<0.000000e+00> : vector<16x128xf32>
    %25 = tpu.matmul %22, %23, %cst_18 {dimension_numbers = #tpu.dot_dimension_numbers<[1], [0], [0], [1], [0, 0, 1, 1], [], []>} : vector<16x128xbf16>, vector<128x128xbf16>, vector<16x128xf32> -> vector<16x128xf32>
    %26 = vector.broadcast %24 : vector<1x128xf32> to vector<16x128xf32>
    %27 = arith.addf %25, %26 : vector<16x128xf32>
    %28 = vector.extract_strided_slice %27 {offsets = [0, 0], sizes = [16, 1], strides = [1, 1]} : vector<16x128xf32> to vector<16x1xf32>
    %29 = arith.negf %28 : vector<16x1xf32>
    %30 = math.exp %29 : vector<16x1xf32>
    %cst_19 = arith.constant 1.000000e+00 : f32
    %31 = vector.broadcast %cst_19 : f32 to vector<16x1xf32>
    %32 = arith.addf %31, %30 : vector<16x1xf32>
    %33 = arith.divf %31, %32 : vector<16x1xf32>
    %34 = arith.truncf %33 : vector<16x1xf32> to vector<16x1xbf16>
    %c0_20 = arith.constant 0 : index
    %c0_21 = arith.constant 0 : index
    %35 = vector.load %arg8[%c0_20, %c0_21] : memref<16x1xbf16, #tpu.memory_space<vmem>>, vector<16x1xbf16>
    tpu.vector_store %arg8[%c0_20, %c0_21], %34 {strides = array<i32>} : memref<16x1xbf16, #tpu.memory_space<vmem>>, vector<16x1xbf16>,
    return
  }
  func.func @transform_0(%arg0: i32) -> (i32, i32) {
    %c0_i32 = arith.constant 0 : i32
    %c0_i32_0 = arith.constant 0 : i32
    return %arg0, %c0_i32 : i32, i32
  }
  func.func @transform_1(%arg0: i32) -> (i32, i32) {
    %c0_i32 = arith.constant 0 : i32
    %c0_i32_0 = arith.constant 0 : i32
    %c0_i32_1 = arith.constant 0 : i32
    return %c0_i32, %c0_i32_0 : i32, i32
  }
  func.func @transform_2(%arg0: i32) -> (i32, i32) {
    %c0_i32 = arith.constant 0 : i32
    %c0_i32_0 = arith.constant 0 : i32
    %c0_i32_1 = arith.constant 0 : i32
    return %c0_i32, %c0_i32_0 : i32, i32
  }
  func.func @transform_3(%arg0: i32) -> (i32, i32) {
    %c0_i32 = arith.constant 0 : i32
    %c0_i32_0 = arith.constant 0 : i32
    %c0_i32_1 = arith.constant 0 : i32
    return %c0_i32, %c0_i32_0 : i32, i32
  }
  func.func @transform_4(%arg0: i32) -> (i32, i32) {
    %c0_i32 = arith.constant 0 : i32
    %c0_i32_0 = arith.constant 0 : i32
    %c0_i32_1 = arith.constant 0 : i32
    return %c0_i32, %c0_i32_0 : i32, i32
  }
  func.func @transform_5(%arg0: i32) -> (i32, i32) {
    %c0_i32 = arith.constant 0 : i32
    %c0_i32_0 = arith.constant 0 : i32
    %c0_i32_1 = arith.constant 0 : i32
    return %c0_i32, %c0_i32_0 : i32, i32
  }
  func.func @transform_6(%arg0: i32) -> (i32, i32) {
    %c0_i32 = arith.constant 0 : i32
    %c0_i32_0 = arith.constant 0 : i32
    %c0_i32_1 = arith.constant 0 : i32
    return %c0_i32, %c0_i32_0 : i32, i32
  }
  func.func @transform_7(%arg0: i32) -> (i32, i32) {
    %c0_i32 = arith.constant 0 : i32
    %c0_i32_0 = arith.constant 0 : i32
    return %arg0, %c0_i32 : i32, i32
  }
}

</mosaic_0001>

<llo_original>
// kernel: tpu_custom_call.1
$region0: #{tpu_custom_call.1}
  #allocation0 [shape = 'u32[]', space=smem, size = 0x4, offset = 0x4, fixed_abs, tag = 'smem constant byte address 0x4 - core index']
  #allocation1 [shape = 'u32[144,128]{1,0:T(1,128)}', space=vmem, size = 0x12000, scoped, tag = 'internal scratch']
  %s0 = inlined_call_operand.hbm [shape: bf16[16,16], index: 0, kind: input, shape index: {}]
  %s1 = inlined_call_operand.hbm [shape: bf16[16,128], index: 1, kind: input, shape index: {}]
  %s2 = inlined_call_operand.vmem [shape: f32[1,128], index: 2, kind: input, shape index: {}]
  %s3 = inlined_call_operand.hbm [shape: bf16[128,128], index: 3, kind: input, shape index: {}]
  %s4 = inlined_call_operand.vmem [shape: f32[1,128], index: 4, kind: input, shape index: {}]
  %s5 = inlined_call_operand.hbm [shape: bf16[128,128], index: 5, kind: input, shape index: {}]
  %s6 = inlined_call_operand.vmem [shape: f32[1,128], index: 6, kind: input, shape index: {}]
  %s7 = inlined_call_operand.vmem [shape: bf16[16,1], index: 7, kind: output, shape index: {}]
  %s8 = sld [smem:[#allocation0]]
  $region54: #{tpu_custom_call.1} parent=0
    _
  %s10 = ssub.s32 1, %s8
  %s11 = scalar_select 0, %s10, %s8
  $region1: #{tpu_custom_call.1} parent=0
    #allocation2 [shape = 'u8[4096]{0}', space=vmem, size = 0x1000, scoped, tag = 'input window, operand 0, single buffered']
    #allocation3 [shape = 's32[1]{0}', space=sflag, size = 0x4, scoped, tag = 'scoped memory for tpu_custom_call.1']
    #allocation4 [shape = 'u8[4096]{0}', space=vmem, size = 0x1000, scoped, tag = 'input window, operand 1, single buffered']
    #allocation5 [shape = 's32[1]{0}', space=sflag, size = 0x4, scoped, tag = 'scoped memory for tpu_custom_call.1']
    #allocation6 [shape = 'u8[32768]{0}', space=vmem, size = 0x8000, scoped, tag = 'input window, operand 3, single buffered']
    #allocation7 [shape = 'u8[32768]{0}', space=vmem, size = 0x8000, scoped, tag = 'input window, operand 5, single buffered']
    #allocation8 [shape = 's32[1]{0}', space=sflag, size = 0x4, scoped, tag = 'scoped memory for tpu_custom_call.1']
    %12 = vsyncpa [#allocation3], 0
    %13 = vsyncpa [#allocation5], 0
    %14 = vsyncpa [#allocation8], 0
    // Predicated region
    $region2: #{tpu_custom_call.1} parent=1 // pred_check
      _
    $region3: #{tpu_custom_call.1} parent=1 // pred_check_branch
      %16 = sbr.rel (0) target = $region5
    $region4: #{tpu_custom_call.1} parent=1 // pred_region
      %s18 = ssub.s32 128, 128
      %19 = vsyncadd [#allocation3], %s18
      %s20 = sshll.u32 [#allocation2], 4
      %s21 = int_to_ptr.vmem [resolvable:$true] %s20
      %26 = dma.hbm_to_vmem [thread:$0]  %s0, 128, %s21, [#allocation3], 64, 64, 4
    $region5: #{tpu_custom_call.1} parent=1 // pred_fallthru
      _
    // Predicated region
    $region6: #{tpu_custom_call.1} parent=1 // pred_check
      _
    $region7: #{tpu_custom_call.1} parent=1 // pred_check_branch
      %28 = sbr.rel (0) target = $region9
    $region8: #{tpu_custom_call.1} parent=1 // pred_region
      %s30 = ssub.s32 128, 128
      %31 = vsyncadd [#allocation5], %s30
      %s32 = sshll.u32 [#allocation4], 4
      %s33 = int_to_ptr.vmem [resolvable:$true] %s32
      %38 = dma.hbm_to_vmem [thread:$0]  %s1, 128, %s33, [#allocation5], 64, 64, 4
    $region9: #{tpu_custom_call.1} parent=1 // pred_fallthru
      _
    // Predicated region
    $region10: #{tpu_custom_call.1} parent=1 // pred_check
      _
    $region11: #{tpu_custom_call.1} parent=1 // pred_check_branch
      %40 = sbr.rel (0) target = $region13
    $region12: #{tpu_custom_call.1} parent=1 // pred_region
      _
    $region13: #{tpu_custom_call.1} parent=1 // pred_fallthru
      _
    // Predicated region
    $region14: #{tpu_custom_call.1} parent=1 // pred_check
      _
    $region15: #{tpu_custom_call.1} parent=1 // pred_check_branch
      %42 = sbr.rel (0) target = $region17
    $region16: #{tpu_custom_call.1} parent=1 // pred_region
      %s44 = ssub.s32 1024, 1024
      %45 = vsyncadd [#allocation5], %s44
      %s46 = sshll.u32 [#allocation6], 4
      %s47 = int_to_ptr.vmem [resolvable:$true] %s46
      %52 = dma.hbm_to_vmem [thread:$0]  %s3, 1024, %s47, [#allocation5], 64, 64, 4
    $region17: #{tpu_custom_call.1} parent=1 // pred_fallthru
      _
    // Predicated region
    $region18: #{tpu_custom_call.1} parent=1 // pred_check
      _
    $region19: #{tpu_custom_call.1} parent=1 // pred_check_branch
      %54 = sbr.rel (0) target = $region21
    $region20: #{tpu_custom_call.1} parent=1 // pred_region
      _
    $region21: #{tpu_custom_call.1} parent=1 // pred_fallthru
      _
    // Predicated region
    $region22: #{tpu_custom_call.1} parent=1 // pred_check
      _
    $region23: #{tpu_custom_call.1} parent=1 // pred_check_branch
      %56 = sbr.rel (0) target = $region25
    $region24: #{tpu_custom_call.1} parent=1 // pred_region
      %s58 = ssub.s32 1024, 1024
      %59 = vsyncadd [#allocation8], %s58
      %s60 = sshll.u32 [#allocation7], 4
      %s61 = int_to_ptr.vmem [resolvable:$true] %s60
      %66 = dma.hbm_to_vmem [thread:$0]  %s5, 1024, %s61, [#allocation8], 64, 64, 4
    $region25: #{tpu_custom_call.1} parent=1 // pred_fallthru
      _
    // Predicated region
    $region26: #{tpu_custom_call.1} parent=1 // pred_check
      _
    $region27: #{tpu_custom_call.1} parent=1 // pred_check_branch
      %68 = sbr.rel (0) target = $region29
    $region28: #{tpu_custom_call.1} parent=1 // pred_region
      _
    $region29: #{tpu_custom_call.1} parent=1 // pred_fallthru
      _
    // Predicated region
    $region30: #{tpu_custom_call.1} parent=1 // pred_check
      _
    $region31: #{tpu_custom_call.1} parent=1 // pred_check_branch
      %70 = sbr.rel (0) target = $region33
    $region32: #{tpu_custom_call.1} parent=1 // pred_region
      %71 = dma.done [#allocation3], 128
    $region33: #{tpu_custom_call.1} parent=1 // pred_fallthru
      _
    // Predicated region
    $region34: #{tpu_custom_call.1} parent=1 // pred_check
      _
    $region35: #{tpu_custom_call.1} parent=1 // pred_check_branch
      %73 = sbr.rel (0) target = $region37
    $region36: #{tpu_custom_call.1} parent=1 // pred_region
      %74 = dma.done [#allocation5], 128
    $region37: #{tpu_custom_call.1} parent=1 // pred_fallthru
      _
    // Predicated region
    $region38: #{tpu_custom_call.1} parent=1 // pred_check
      _
    $region39: #{tpu_custom_call.1} parent=1 // pred_check_branch
      %76 = sbr.rel (0) target = $region41
    $region40: #{tpu_custom_call.1} parent=1 // pred_region
      %77 = dma.done [#allocation5], 1024
    $region41: #{tpu_custom_call.1} parent=1 // pred_fallthru
      _
    // Predicated region
    $region42: #{tpu_custom_call.1} parent=1 // pred_check
      _
    $region43: #{tpu_custom_call.1} parent=1 // pred_check_branch
      %79 = sbr.rel (0) target = $region45
    $region44: #{tpu_custom_call.1} parent=1 // pred_region
      %80 = dma.done [#allocation8], 1024
    $region45: #{tpu_custom_call.1} parent=1 // pred_fallthru
      _
    %v82 = vld [vmem:[#allocation2] sm:$0xf]
    %v83 = vld [vmem:[#allocation2 + $0x4] sm:$0xf]
    %v84 = vld [vmem:[#allocation4] sm:$0xf]
    %v85 = vld [vmem:[#allocation4 + $0x4] sm:$0xf]
    %v86 = vld [vmem:[%s2] sm:$0x1]
    %v88 = vlaneseq
    %v89 = vshrl.u32 %v88, 7
    %v90 = vsub.s32 0, %v89
    %v91 = vrot.slane %v86, %v90
    %v95 = vunpack.c.l.b16 %v82
    %v96 = vunpack.c.l.b16 %v83
    %v97 = vpack.c.b16 %v96, %v95
    %v100 = vunpack.c.l.b16 %v84
    %v101 = vunpack.c.l.b16 %v85
    %v102 = vpack.c.b16 %v101, %v100
    %vm104 = vcmask 130048
    %v106 = vsel %vm104, %v97, 0
    %108 = vmatprep.subr.bf16.mxu0 0
    %109 = vmatpush1.bf16.msra.mxu0 %v102
    %110 = vmatprep.subr.bf16.mxu0 0
    %111 = vmatpush1.bf16.msra.mxu0 0
    %112 = vmatprep.subr.bf16.mxu0 0
    %113 = vmatpush1.bf16.msra.mxu0 0
    %114 = vmatprep.subr.bf16.mxu0 0
    %115 = vmatpush1.bf16.msra.mxu0 0
    %116 = vmatprep.subr.bf16.mxu0 0
    %117 = vmatpush1.bf16.msra.mxu0 0
    %118 = vmatprep.subr.bf16.mxu0 0
    %119 = vmatpush1.bf16.msra.mxu0 0
    %120 = vmatprep.subr.bf16.mxu0 0
    %121 = vmatpush1.bf16.msra.mxu0 0
    %122 = vmatprep.subr.bf16.mxu0 0
    %123 = vmatpush1.bf16.msra.mxu0 0
    %124 = vmatprep.subr.bf16.mxu0 0
    %125 = vmatpush1.bf16.msra.mxu0 0
    %126 = vmatprep.subr.bf16.mxu0 0
    %127 = vmatpush1.bf16.msra.mxu0 0
    %128 = vmatprep.subr.bf16.mxu0 0
    %129 = vmatpush1.bf16.msra.mxu0 0
    %130 = vmatprep.subr.bf16.mxu0 0
    %131 = vmatpush1.bf16.msra.mxu0 0
    %132 = vmatprep.subr.bf16.mxu0 0
    %133 = vmatpush1.bf16.msra.mxu0 0
    %134 = vmatprep.subr.bf16.mxu0 0
    %135 = vmatpush1.bf16.msra.mxu0 0
    %136 = vmatprep.subr.bf16.mxu0 0
    %137 = vmatpush1.bf16.msra.mxu0 0
    %138 = vmatprep.subr.bf16.mxu0 0
    %139 = vmatpush1.bf16.msra.mxu0 0
    %140 = vmatprep.mubr.bf16.mxu0 0
    %141 = vmatmul.mubr.bf16.gmra.mrb[0].mxu0 %v106
    %v142 = vpop.f32.mrb[0].mxu0
    %v143 = vadd.f32 %v91, %v142
    %v144 = vpop.f32.mrb[0].mxu0
    %v145 = vpop.f32.mrb[0].mxu0
    %v146 = vadd.f32 %v91, %v145
    %v147 = vpop.f32.mrb[0].mxu0
    %148 = vdwg.mxu0
    %vm149 = vcmp.ge.f32.partialorder %v143, 0.0
    %vm150 = vcmp.ge.f32.partialorder %v146, 0.0
    %v151 = vmul.f32 %v143, 0.2
    %v152 = vmul.f32 %v146, 0.2
    %v153 = vsel %vm149, %v143, %v151
    %v154 = vsel %vm150, %v146, %v152
    %v155 = vpack.c.bf16 %v154, %v153
    %v156 = vld [vmem:[#allocation6] sm:$0xf]
    %v157 = vld [vmem:[#allocation6 + $0x4] sm:$0xf]
    %v158 = vld [vmem:[#allocation6 + $0x8] sm:$0xf]
    %v159 = vld [vmem:[#allocation6 + $0xc] sm:$0xf]
    %v160 = vld [vmem:[#allocation6 + $0x10] sm:$0xf]
    %v161 = vld [vmem:[#allocation6 + $0x14] sm:$0xf]
    %v162 = vld [vmem:[#allocation6 + $0x18] sm:$0xf]
    %v163 = vld [vmem:[#allocation6 + $0x1c] sm:$0xf]
    %v164 = vld [vmem:[#allocation6 + $0x20] sm:$0xf]
    %v165 = vld [vmem:[#allocation6 + $0x24] sm:$0xf]
    %v166 = vld [vmem:[#allocation6 + $0x28] sm:$0xf]
    %v167 = vld [vmem:[#allocation6 + $0x2c] sm:$0xf]
    %v168 = vld [vmem:[#allocation6 + $0x30] sm:$0xf]
    %v169 = vld [vmem:[#allocation6 + $0x34] sm:$0xf]
    %v170 = vld [vmem:[#allocation6 + $0x38] sm:$0xf]
    %v171 = vld [vmem:[#allocation6 + $0x3c] sm:$0xf]
    %v172 = vld [vmem:[%s4] sm:$0x1]
    %v174 = vlaneseq
    %v175 = vshrl.u32 %v174, 7
    %v176 = vsub.s32 0, %v175
    %v177 = vrot.slane %v172, %v176
    %v195 = vunpack.c.l.b16 %v156
    %v196 = vunpack.c.l.b16 %v157
    %v197 = vunpack.c.l.b16 %v158
    %v198 = vunpack.c.l.b16 %v159
    %v199 = vunpack.c.l.b16 %v160
    %v200 = vunpack.c.l.b16 %v161
    %v201 = vunpack.c.l.b16 %v162
    %v202 = vunpack.c.l.b16 %v163
    %v203 = vunpack.c.l.b16 %v164
    %v204 = vunpack.c.l.b16 %v165
    %v205 = vunpack.c.l.b16 %v166
    %v206 = vunpack.c.l.b16 %v167
    %v207 = vunpack.c.l.b16 %v168
    %v208 = vunpack.c.l.b16 %v169
    %v209 = vunpack.c.l.b16 %v170
    %v210 = vunpack.c.l.b16 %v171
    %v211 = vpack.c.b16 %v196, %v195
    %v212 = vpack.c.b16 %v198, %v197
    %v213 = vpack.c.b16 %v200, %v199
    %v214 = vpack.c.b16 %v202, %v201
    %v215 = vpack.c.b16 %v204, %v203
    %v216 = vpack.c.b16 %v206, %v205
    %v217 = vpack.c.b16 %v208, %v207
    %v218 = vpack.c.b16 %v210, %v209
    %227 = vmatprep.subr.bf16.mxu0 0
    %228 = vmatpush1.bf16.msra.mxu0 %v211
    %229 = vmatprep.subr.bf16.mxu0 0
    %230 = vmatpush1.bf16.msra.mxu0 %v212
    %231 = vmatprep.subr.bf16.mxu0 0
    %232 = vmatpush1.bf16.msra.mxu0 %v213
    %233 = vmatprep.subr.bf16.mxu0 0
    %234 = vmatpush1.bf16.msra.mxu0 %v214
    %235 = vmatprep.subr.bf16.mxu0 0
    %236 = vmatpush1.bf16.msra.mxu0 %v215
    %237 = vmatprep.subr.bf16.mxu0 0
    %238 = vmatpush1.bf16.msra.mxu0 %v216
    %239 = vmatprep.subr.bf16.mxu0 0
    %240 = vmatpush1.bf16.msra.mxu0 %v217
    %241 = vmatprep.subr.bf16.mxu0 0
    %242 = vmatpush1.bf16.msra.mxu0 %v218
    %243 = vmatprep.subr.bf16.mxu0 0
    %244 = vmatpush1.bf16.msra.mxu0 0
    %245 = vmatprep.subr.bf16.mxu0 0
    %246 = vmatpush1.bf16.msra.mxu0 0
    %247 = vmatprep.subr.bf16.mxu0 0
    %248 = vmatpush1.bf16.msra.mxu0 0
    %249 = vmatprep.subr.bf16.mxu0 0
    %250 = vmatpush1.bf16.msra.mxu0 0
    %251 = vmatprep.subr.bf16.mxu0 0
    %252 = vmatpush1.bf16.msra.mxu0 0
    %253 = vmatprep.subr.bf16.mxu0 0
    %254 = vmatpush1.bf16.msra.mxu0 0
    %255 = vmatprep.subr.bf16.mxu0 0
    %256 = vmatpush1.bf16.msra.mxu0 0
    %257 = vmatprep.subr.bf16.mxu0 0
    %258 = vmatpush1.bf16.msra.mxu0 0
    %259 = vmatprep.mubr.bf16.mxu0 0
    %260 = vmatmul.mubr.bf16.gmra.mrb[0].mxu0 %v155
    %v261 = vpop.f32.mrb[0].mxu0
    %v262 = vadd.f32 %v177, %v261
    %v263 = vpop.f32.mrb[0].mxu0
    %v264 = vpop.f32.mrb[0].mxu0
    %v265 = vadd.f32 %v177, %v264
    %v266 = vpop.f32.mrb[0].mxu0
    %267 = vdwg.mxu0
    %vm268 = vcmp.ge.f32.partialorder %v262, 0.0
    %vm269 = vcmp.ge.f32.partialorder %v265, 0.0
    %v270 = vmul.f32 %v262, 0.2
    %v271 = vmul.f32 %v265, 0.2
    %v272 = vsel %vm268, %v262, %v270
    %v273 = vsel %vm269, %v265, %v271
    %v274 = vpack.c.bf16 %v273, %v272
    %v275 = vld [vmem:[#allocation7] sm:$0xf]
    %v276 = vld [vmem:[#allocation7 + $0x4] sm:$0xf]
    %v277 = vld [vmem:[#allocation7 + $0x8] sm:$0xf]
    %v278 = vld [vmem:[#allocation7 + $0xc] sm:$0xf]
    %v279 = vld [vmem:[#allocation7 + $0x10] sm:$0xf]
    %v280 = vld [vmem:[#allocation7 + $0x14] sm:$0xf]
    %v281 = vld [vmem:[#allocation7 + $0x18] sm:$0xf]
    %v282 = vld [vmem:[#allocation7 + $0x1c] sm:$0xf]
    %v283 = vld [vmem:[#allocation7 + $0x20] sm:$0xf]
    %v284 = vld [vmem:[#allocation7 + $0x24] sm:$0xf]
    %v285 = vld [vmem:[#allocation7 + $0x28] sm:$0xf]
    %v286 = vld [vmem:[#allocation7 + $0x2c] sm:$0xf]
    %v287 = vld [vmem:[#allocation7 + $0x30] sm:$0xf]
    %v288 = vld [vmem:[#allocation7 + $0x34] sm:$0xf]
    %v289 = vld [vmem:[#allocation7 + $0x38] sm:$0xf]
    %v290 = vld [vmem:[#allocation7 + $0x3c] sm:$0xf]
    %v291 = vld [vmem:[%s6] sm:$0x1]
    %v293 = vlaneseq
    %v294 = vshrl.u32 %v293, 7
    %v295 = vsub.s32 0, %v294
    %v296 = vrot.slane %v291, %v295
    %v314 = vunpack.c.l.b16 %v275
    %v315 = vunpack.c.l.b16 %v276
    %v316 = vunpack.c.l.b16 %v277
    %v317 = vunpack.c.l.b16 %v278
    %v318 = vunpack.c.l.b16 %v279
    %v319 = vunpack.c.l.b16 %v280
    %v320 = vunpack.c.l.b16 %v281
    %v321 = vunpack.c.l.b16 %v282
    %v322 = vunpack.c.l.b16 %v283
    %v323 = vunpack.c.l.b16 %v284
    %v324 = vunpack.c.l.b16 %v285
    %v325 = vunpack.c.l.b16 %v286
    %v326 = vunpack.c.l.b16 %v287
    %v327 = vunpack.c.l.b16 %v288
    %v328 = vunpack.c.l.b16 %v289
    %v329 = vunpack.c.l.b16 %v290
    %v330 = vpack.c.b16 %v315, %v314
    %v331 = vpack.c.b16 %v317, %v316
    %v332 = vpack.c.b16 %v319, %v318
    %v333 = vpack.c.b16 %v321, %v320
    %v334 = vpack.c.b16 %v323, %v322
    %v335 = vpack.c.b16 %v325, %v324
    %v336 = vpack.c.b16 %v327, %v326
    %v337 = vpack.c.b16 %v329, %v328
    %346 = vmatprep.subr.bf16.mxu0 0
    %347 = vmatpush1.bf16.msra.mxu0 %v330
    %348 = vmatprep.subr.bf16.mxu0 0
    %349 = vmatpush1.bf16.msra.mxu0 %v331
    %350 = vmatprep.subr.bf16.mxu0 0
    %351 = vmatpush1.bf16.msra.mxu0 %v332
    %352 = vmatprep.subr.bf16.mxu0 0
    %353 = vmatpush1.bf16.msra.mxu0 %v333
    %354 = vmatprep.subr.bf16.mxu0 0
    %355 = vmatpush1.bf16.msra.mxu0 %v334
    %356 = vmatprep.subr.bf16.mxu0 0
    %357 = vmatpush1.bf16.msra.mxu0 %v335
    %358 = vmatprep.subr.bf16.mxu0 0
    %359 = vmatpush1.bf16.msra.mxu0 %v336
    %360 = vmatprep.subr.bf16.mxu0 0
    %361 = vmatpush1.bf16.msra.mxu0 %v337
    %362 = vmatprep.subr.bf16.mxu0 0
    %363 = vmatpush1.bf16.msra.mxu0 0
    %364 = vmatprep.subr.bf16.mxu0 0
    %365 = vmatpush1.bf16.msra.mxu0 0
    %366 = vmatprep.subr.bf16.mxu0 0
    %367 = vmatpush1.bf16.msra.mxu0 0
    %368 = vmatprep.subr.bf16.mxu0 0
    %369 = vmatpush1.bf16.msra.mxu0 0
    %370 = vmatprep.subr.bf16.mxu0 0
    %371 = vmatpush1.bf16.msra.mxu0 0
    %372 = vmatprep.subr.bf16.mxu0 0
    %373 = vmatpush1.bf16.msra.mxu0 0
    %374 = vmatprep.subr.bf16.mxu0 0
    %375 = vmatpush1.bf16.msra.mxu0 0
    %376 = vmatprep.subr.bf16.mxu0 0
    %377 = vmatpush1.bf16.msra.mxu0 0
    %378 = vmatprep.mubr.bf16.mxu0 0
    %379 = vmatmul.mubr.bf16.gmra.mrb[0].mxu0 %v274
    %v380 = vpop.f32.mrb[0].mxu0
    %v381 = vadd.f32 %v296, %v380
    %v382 = vpop.f32.mrb[0].mxu0
    %v383 = vpop.f32.mrb[0].mxu0
    %v384 = vadd.f32 %v296, %v383
    %v385 = vpop.f32.mrb[0].mxu0
    %386 = vdwg.mxu0
    %v387 = vxor.u32 %v381, 2147483648
    %v388 = vxor.u32 %v384, 2147483648
    %v389 = vmul.f32 %v387, 1.442695
    %v390 = vpow.pop %v389
    %v391 = vmul.f32 %v388, 1.442695
    %v392 = vpow.pop %v391
    %v393 = vadd.f32 %v390, 1.0
    %v394 = vadd.f32 %v392, 1.0
    %v395 = vrcp.pop %v393
    %v396 = vmul.f32 1.0, %v395
    %v397 = vrcp.pop %v394
    %v398 = vmul.f32 1.0, %v397
    %v399 = vpack.c.bf16 %v398, %v396
    %v401 = vunpack.c.l.b16 %v399
    %v402 = vunpack.c.h.b16 %v399
    %v403 = vpack.c.b16 %v401, %v401
    %v404 = vpack.c.b16 %v402, %v402
    %vm407 = vcmask 3072
    %408 = vst.msk [vmem:[%s7] sm:$0xf] %vm407, %v403
    %409 = vst.msk [vmem:[%s7 + $0x4] sm:$0xf] %vm407, %v404
    // Predicated region
    $region46: #{tpu_custom_call.1} parent=1 // pred_check
      _
    $region47: #{tpu_custom_call.1} parent=1 // pred_check_branch
      %411 = sbr.rel (0) target = $region49
    $region48: #{tpu_custom_call.1} parent=1 // pred_region
      _
    $region49: #{tpu_custom_call.1} parent=1 // pred_fallthru
      _
    // Predicated region
    $region50: #{tpu_custom_call.1} parent=1 // pred_check
      _
    $region51: #{tpu_custom_call.1} parent=1 // pred_check_branch
      %413 = sbr.rel (0) target = $region53
    $region52: #{tpu_custom_call.1} parent=1 // pred_region
      _
    $region53: #{tpu_custom_call.1} parent=1 // pred_fallthru
      _
    %414 = vsyncpa [#allocation3], 1
    %415 = vsyncpa [#allocation5], 1
    %416 = vsyncpa [#allocation8], 1

</llo_original>
